<compile_context>
chip_gen: v6e
topology: v6e:2x2x1
jax: 0.10.0
libtpu: 0.0.40
codegen_flags: <defaults>
</compile_context>

<pallas_src>
import functools

import jax
import jax.numpy as jnp
from jax.experimental import pallas as pl
from jax.experimental.pallas import tpu as pltpu


def _round_up(a: int, b: int) -> int:
    return (a + b - 1) // b * b


def _tpu_vmem_capacity_bytes() -> int:
    """Physical VMEM per core; falls back to a v7x-safe 64 MiB if unknown."""
    try:
        return int(pltpu.get_tpu_info().vmem_capacity_bytes)
    except Exception:
        return 64 << 20


# ---------------------------------------------------------------------------
# In-kernel math helpers.
# ---------------------------------------------------------------------------

def _erf(x):
    """Abramowitz & Stegun 7.1.26 erf approximation, |error| < 1.5e-7 (f32).

    Uses only mul/add/div/abs/where/exp so exact-GELU parity with F.gelu's
    default does not depend on an erf primitive lowering in Mosaic.
    """
    a1, a2, a3, a4, a5 = (0.254829592, -0.284496736, 1.421413741,
                          -1.453152027, 1.061405429)
    p = 0.3275911
    sign = jnp.where(x < 0.0, -1.0, 1.0).astype(x.dtype)
    ax = jnp.abs(x)
    t = 1.0 / (1.0 + p * ax)
    poly = ((((a5 * t + a4) * t + a3) * t + a2) * t + a1) * t
    return sign * (1.0 - poly * jnp.exp(-ax * ax))


def _gelu(x, approximate: bool):
    if approximate:
        return jax.nn.gelu(x, approximate=True)         # tanh form -> EUP
    return 0.5 * x * (1.0 + _erf(x * 0.7071067811865476))


# ---------------------------------------------------------------------------
# Kernels.
# ---------------------------------------------------------------------------

def _ffn_resident_kernel(x_ref, w1_ref, b1_ref, w2_ref, b2_ref, o_ref, *,
                         approximate_gelu: bool):
    """Single-pass FFN; full w1/w2 stay VMEM-resident (constant block index)."""
    h = jnp.dot(x_ref[...], w1_ref[...], preferred_element_type=jnp.float32)
    h = _gelu(h + b1_ref[...], approximate_gelu)
    out = jnp.dot(h.astype(w2_ref.dtype), w2_ref[...],
                  preferred_element_type=jnp.float32)
    o_ref[...] = (out + b2_ref[...]).astype(o_ref.dtype)


def _ffn_streaming_kernel(x_ref, w1_ref, b1_ref, w2_ref, b2_ref, o_ref,
                          acc_ref, *, approximate_gelu: bool):
    """d_ff-tiled FFN; weight tiles streamed along reduction axis j, f32 acc."""
    j = pl.program_id(1)

    @pl.when(j == 0)
    def _():
        acc_ref[...] = jnp.zeros_like(acc_ref)

    h = jnp.dot(x_ref[...], w1_ref[...], preferred_element_type=jnp.float32)
    h = _gelu(h + b1_ref[...], approximate_gelu)
    acc_ref[...] += jnp.dot(h.astype(w2_ref.dtype), w2_ref[...],
                            preferred_element_type=jnp.float32)

    @pl.when(j == pl.num_programs(1) - 1)
    def _():
        o_ref[...] = (acc_ref[...] + b2_ref[...]).astype(o_ref.dtype)


# ---------------------------------------------------------------------------
# Host-side wrappers.
# ---------------------------------------------------------------------------

def prepare_ffn_params(w1, b1, w2, b2, *, compute_dtype=jnp.bfloat16):
    """One-time weight prep (hoisted out of the per-call path).

    w1: (d_model, d_ff) (= torch linear1.weight.T), b1: (d_ff,)
    w2: (d_ff, d_model) (= torch linear2.weight.T), b2: (d_model,)
    Feature dims are padded to 256-lane multiples (128 for tiny dims) so the
    matmul operands and output stores are lane-dense and fill the MXU.
    Zero padding is mathematically inert and sliced off on output.
    """
    d_model, d_ff = w1.shape
    d_model_p = _round_up(d_model, 256 if d_model > 128 else 128)
    d_ff_p = _round_up(d_ff, 256 if d_ff > 128 else 128)
    w1p = jnp.pad(w1.astype(compute_dtype),
                  ((0, d_model_p - d_model), (0, d_ff_p - d_ff)))
    w2p = jnp.pad(w2.astype(compute_dtype),
                  ((0, d_ff_p - d_ff), (0, d_model_p - d_model)))
    b1p = jnp.pad(b1.astype(jnp.float32), (0, d_ff_p - d_ff)).reshape(1, d_ff_p)
    b2p = jnp.pad(b2.astype(jnp.float32),
                  (0, d_model_p - d_model)).reshape(1, d_model_p)
    return dict(w1=w1p, b1=b1p, w2=w2p, b2=b2p, d_model=d_model, d_ff=d_ff,
                d_model_p=d_model_p, d_ff_p=d_ff_p, compute_dtype=compute_dtype)


def apply_feed_forward(x, params, *, out_dtype=None, approximate_gelu=False,
                       vmem_budget_bytes=None):
    """linear1 -> GELU -> linear2 (dropout = identity; eval mode)."""
    d_model = params["d_model"]
    d_model_p = params["d_model_p"]
    d_ff_p = params["d_ff_p"]
    compute_dtype = params["compute_dtype"]
    assert x.shape[-1] == d_model

    out_dtype = x.dtype if out_dtype is None else jnp.dtype(out_dtype)
    isz = jnp.dtype(compute_dtype).itemsize
    osz = jnp.dtype(out_dtype).itemsize
    row_align = 16 if isz == 2 else 8

    x2d = x.reshape(-1, d_model)
    M = x2d.shape[0]
    M_p = _round_up(max(M, 1), row_align)

    vmem_cap = _tpu_vmem_capacity_bytes()
    budget = (int(vmem_budget_bytes) if vmem_budget_bytes is not None
              else vmem_cap * 7 // 8)      # ~8 MiB headroom on v7x, ~16 MiB on v5e/v6e
    slack = 2 << 20                        # compiler internal scratch headroom

    # ---- row tile: big for arithmetic intensity, generation/VMEM aware -----
    tm_target = 1024 if vmem_cap >= (96 << 20) else 256     # v5e/v6e vs v7x
    tm = min(_round_up(tm_target, row_align), M_p)
    if M_p >= 2 * row_align:               # >=2 tiles so v7x megacore can split M
        tm = min(tm, _round_up(pl.cdiv(M_p, 2), row_align))

    tm_candidates = []
    t = tm
    while True:
        tm_candidates.append(t)
        if t <= row_align:
            break
        t = max(row_align, _round_up(t // 2, row_align))

    def resident_fits(tm_):
        w_bytes = 2 * 2 * d_model_p * d_ff_p * isz           # w1+w2 (buffer-safe 2x)
        bias_bytes = 2 * (d_ff_p + d_model_p) * 4
        xo_bytes = 2 * tm_ * d_model_p * (isz + osz)          # x / out double-buffered
        h_bytes = 2 * tm_ * d_ff_p * 4                        # f32 hidden intermediates
        return w_bytes + bias_bytes + xo_bytes + h_bytes + slack <= budget

    def streaming_fits(tm_, tf_):
        w_bytes = 2 * 2 * d_model_p * tf_ * isz
        bias_bytes = 2 * tf_ * 4 + 2 * d_model_p * 4
        xo_bytes = 2 * tm_ * d_model_p * (isz + osz)
        acc_bytes = tm_ * d_model_p * 4
        h_bytes = 2 * tm_ * tf_ * 4
        return (w_bytes + bias_bytes + xo_bytes + acc_bytes + h_bytes
                + slack <= budget)

    tf_candidates = [tf for tf in (1024, 512, 256, 128) if d_ff_p % tf == 0]

    mode, tm_eff, tf_eff = None, tm_candidates[-1], tf_candidates[-1]
    for t in tm_candidates:                 # resident-weights fast path first
        if resident_fits(t):
            mode, tm_eff, tf_eff = "resident", t, d_ff_p
            break
    if mode is None:                        # stream d_ff tiles with f32 accumulator
        for t in tm_candidates:
            for tf in tf_candidates:
                if streaming_fits(t, tf):
                    mode, tm_eff, tf_eff = "streaming", t, tf
                    break
            if mode is not None:
                break
    if mode is None:                        # nothing "fits": smallest tiles anyway
        mode = "streaming"

    # Per-call input prep: one fused pad+cast pass over x only (weights were
    # prepared once). Rows padded only to sublane alignment; the last row tile
    # may be ragged (Pallas masks the out-of-range writeback rows).
    x2 = jnp.pad(x2d.astype(compute_dtype),
                 ((0, M_p - M), (0, d_model_p - d_model)))

    grid_m = pl.cdiv(M_p, tm_eff)

    if mode == "resident":
        kernel = functools.partial(_ffn_resident_kernel,
                                   approximate_gelu=approximate_gelu)
        grid = (grid_m,)
        in_specs = [
            pl.BlockSpec((tm_eff, d_model_p), lambda i: (i, 0)),     # x row tile
            pl.BlockSpec((d_model_p, d_ff_p), lambda i: (0, 0)),     # w1 (resident)
            pl.BlockSpec((1, d_ff_p), lambda i: (0, 0)),             # b1
            pl.BlockSpec((d_ff_p, d_model_p), lambda i: (0, 0)),     # w2 (resident)
            pl.BlockSpec((1, d_model_p), lambda i: (0, 0)),          # b2
        ]
        out_specs = pl.BlockSpec((tm_eff, d_model_p), lambda i: (i, 0))
        scratch_shapes = []
        dim_sem = ("parallel",)
    else:
        kernel = functools.partial(_ffn_streaming_kernel,
                                   approximate_gelu=approximate_gelu)
        grid = (grid_m, d_ff_p // tf_eff)   # reduction (d_ff) axis last
        in_specs = [
            pl.BlockSpec((tm_eff, d_model_p), lambda i, j: (i, 0)),  # x row tile
            pl.BlockSpec((d_model_p, tf_eff), lambda i, j: (0, j)),  # w1 col tile
            pl.BlockSpec((1, tf_eff), lambda i, j: (0, j)),          # b1 tile
            pl.BlockSpec((tf_eff, d_model_p), lambda i, j: (j, 0)),  # w2 row tile
            pl.BlockSpec((1, d_model_p), lambda i, j: (0, 0)),       # b2
        ]
        out_specs = pl.BlockSpec((tm_eff, d_model_p), lambda i, j: (i, 0))
        scratch_shapes = [pltpu.VMEM((tm_eff, d_model_p), jnp.float32)]
        dim_sem = ("parallel", "arbitrary")

    vmem_limit = int(min(max(budget, 32 << 20), vmem_cap - (2 << 20)))

    out = pl.pallas_call(
        kernel,
        out_shape=jax.ShapeDtypeStruct((M_p, d_model_p), out_dtype),
        grid_spec=pltpu.PrefetchScalarGridSpec(
            num_scalar_prefetch=0,
            grid=grid,
            in_specs=in_specs,
            out_specs=out_specs,
            scratch_shapes=scratch_shapes,
        ),
        compiler_params=pltpu.CompilerParams(
            dimension_semantics=dim_sem,
            vmem_limit_bytes=vmem_limit,
        ),
    )(x2, params["w1"], params["b1"], params["w2"], params["b2"])

    return out[:M, :d_model].reshape(x.shape)


def feed_forward(x, w1, b1, w2, b2, *, compute_dtype=jnp.bfloat16,
                 out_dtype=None, approximate_gelu=False, vmem_budget_bytes=None):
    """One-shot convenience wrapper.  For repeated calls, run
    prepare_ffn_params() once at init and reuse it with apply_feed_forward()."""
    params = prepare_ffn_params(w1, b1, w2, b2, compute_dtype=compute_dtype)
    return apply_feed_forward(x, params, out_dtype=out_dtype,
                              approximate_gelu=approximate_gelu,
                              vmem_budget_bytes=vmem_budget_bytes)


# ---------------------------------------------------------------------------
# Self-test.
# ---------------------------------------------------------------------------

if __name__ == "__main__":
    key = jax.random.PRNGKey(0)

    def make_weights(k, d_model, d_ff):
        kw1, kb1, kw2, kb2 = jax.random.split(k, 4)
        lim1 = 1.0 / jnp.sqrt(d_model)
        lim2 = 1.0 / jnp.sqrt(d_ff)
        w1 = jax.random.uniform(kw1, (d_model, d_ff), minval=-lim1, maxval=lim1,
                                dtype=jnp.float32)
        b1 = jax.random.uniform(kb1, (d_ff,), minval=-lim1, maxval=lim1,
                                dtype=jnp.float32)
        w2 = jax.random.uniform(kw2, (d_ff, d_model), minval=-lim2, maxval=lim2,
                                dtype=jnp.float32)
        b2 = jax.random.uniform(kb2, (d_model,), minval=-lim2, maxval=lim2,
                                dtype=jnp.float32)
        return w1, b1, w2, b2

    def reference(x, w1, b1, w2, b2, bf16):
        if bf16:  # same matmul-input precision as the kernel (bf16 MXU, f32 acc)
            xr = x.reshape(-1, x.shape[-1]).astype(jnp.bfloat16)
            h = jnp.dot(xr, w1.astype(jnp.bfloat16),
                        preferred_element_type=jnp.float32) + b1
            h = jax.nn.gelu(h, approximate=False)
            o = jnp.dot(h.astype(jnp.bfloat16), w2.astype(jnp.bfloat16),
                        preferred_element_type=jnp.float32) + b2
            return o.reshape(x.shape[:-1] + (w2.shape[1],))
        h = jax.nn.gelu(x @ w1 + b1, approximate=False)
        return h @ w2 + b2

    # ---- test 1: tiny shapes -> resident-weights fast path ------------------
    B, S, d_model, d_ff = 2, 8, 32, 64
    kx, kw, k2 = jax.random.split(key, 3)
    x = jax.random.normal(kx, (B, S, d_model), dtype=jnp.float32)
    w1, b1, w2, b2 = make_weights(kw, d_model, d_ff)

    y = feed_forward(x, w1, b1, w2, b2)
    jax.block_until_ready(y)
    assert y.shape == (B, S, d_model) and y.dtype == x.dtype
    assert jnp.allclose(y, reference(x, w1, b1, w2, b2, bf16=False),
                        atol=5e-2, rtol=5e-2)
    assert jnp.allclose(y, reference(x, w1, b1, w2, b2, bf16=True),
                        atol=5e-3, rtol=5e-3)

    # ---- test 2: forced tiny VMEM budget -> streamed/accumulator path -------
    # (also exercises a ragged last row tile: M = 80, tm = 48)
    B2, S2, d_model2, d_ff2 = 2, 40, 256, 1024
    kx2, kw2_ = jax.random.split(k2)
    x_s = jax.random.normal(kx2, (B2, S2, d_model2), dtype=jnp.float32)
    w1s, b1s, w2s, b2s = make_weights(kw2_, d_model2, d_ff2)

    y_s = feed_forward(x_s, w1s, b1s, w2s, b2s, vmem_budget_bytes=4 << 20)
    jax.block_until_ready(y_s)
    assert y_s.shape == (B2, S2, d_model2)
    assert jnp.allclose(y_s, reference(x_s, w1s, b1s, w2s, b2s, bf16=True),
                        atol=2e-3, rtol=2e-2)

    print("KERNEL_OK")
</pallas_src>

<mosaic_0001>
module attributes {stable_mosaic.version = 11 : i64} {
  func.func @_ffn_resident_kernel(%arg0: i32, %arg1: memref<16x128xbf16, #tpu.memory_space<vmem>>, %arg2: memref<128x128xbf16, #tpu.memory_space<vmem>>, %arg3: memref<1x128xf32, #tpu.memory_space<vmem>>, %arg4: memref<128x128xbf16, #tpu.memory_space<vmem>>, %arg5: memref<1x128xf32, #tpu.memory_space<vmem>>, %arg6: memref<16x128xf32, #tpu.memory_space<vmem>>) attributes {dimension_semantics = [#tpu.dimension_semantics<parallel>], iteration_bounds = array<i64: 1>, scalar_prefetch = 0 : i64, scratch_operands = 0 : i64, tpu.core_type = #tpu.core_type<tc>, window_params = [{transform_indices = @transform_0, window_bounds = array<i64: 16, 128>}, {pipeline_mode = #tpu.pipeline_mode<synchronous>, transform_indices = @transform_1, window_bounds = array<i64: 128, 128>}, {pipeline_mode = #tpu.pipeline_mode<synchronous>, transform_indices = @transform_2, window_bounds = array<i64: 1, 128>}, {pipeline_mode = #tpu.pipeline_mode<synchronous>, transform_indices = @transform_3, window_bounds = array<i64: 128, 128>}, {pipeline_mode = #tpu.pipeline_mode<synchronous>, transform_indices = @transform_4, window_bounds = array<i64: 1, 128>}, {transform_indices = @transform_5, window_bounds = array<i64: 16, 128>}]} {
    %c0 = arith.constant 0 : index
    %c0_0 = arith.constant 0 : index
    %0 = vector.load %arg1[%c0, %c0_0] : memref<16x128xbf16, #tpu.memory_space<vmem>>, vector<16x128xbf16>
    %c0_1 = arith.constant 0 : index
    %c0_2 = arith.constant 0 : index
    %1 = vector.load %arg2[%c0_1, %c0_2] : memref<128x128xbf16, #tpu.memory_space<vmem>>, vector<128x128xbf16>
    %cst = arith.constant dense<0.000000e+00> : vector<16x128xf32>
    %2 = tpu.matmul %0, %1, %cst {dimension_numbers = #tpu.dot_dimension_numbers<[1], [0], [0], [1], [0, 0, 1, 1], [], []>} : vector<16x128xbf16>, vector<128x128xbf16>, vector<16x128xf32> -> vector<16x128xf32>
    %c0_3 = arith.constant 0 : index
    %c0_4 = arith.constant 0 : index
    %3 = vector.load %arg3[%c0_3, %c0_4] : memref<1x128xf32, #tpu.memory_space<vmem>>, vector<1x128xf32>
    %4 = vector.broadcast %3 : vector<1x128xf32> to vector<16x128xf32>
    %5 = arith.addf %2, %4 : vector<16x128xf32>
    %cst_5 = arith.constant 5.000000e-01 : f32
    %6 = vector.broadcast %cst_5 : f32 to vector<16x128xf32>
    %7 = arith.mulf %6, %5 : vector<16x128xf32>
    %cst_6 = arith.constant 0.707106769 : f32
    %8 = vector.broadcast %cst_6 : f32 to vector<16x128xf32>
    %9 = arith.mulf %5, %8 : vector<16x128xf32>
    %cst_7 = arith.constant 0.000000e+00 : f32
    %10 = vector.broadcast %cst_7 : f32 to vector<16x128xf32>
    %11 = arith.cmpf olt, %9, %10 : vector<16x128xf32>
    %cst_8 = arith.constant -1.000000e+00 : f32
    %cst_9 = arith.constant 1.000000e+00 : f32
    %12 = vector.broadcast %cst_8 : f32 to vector<16x128xf32>
    %13 = vector.broadcast %cst_9 : f32 to vector<16x128xf32>
    %14 = arith.select %11, %12, %13 : vector<16x128xi1>, vector<16x128xf32>
    %15 = math.absf %9 : vector<16x128xf32>
    %cst_10 = arith.constant 0.327591091 : f32
    %16 = vector.broadcast %cst_10 : f32 to vector<16x128xf32>
    %17 = arith.mulf %16, %15 : vector<16x128xf32>
    %cst_11 = arith.constant 1.000000e+00 : f32
    %18 = vector.broadcast %cst_11 : f32 to vector<16x128xf32>
    %19 = arith.addf %18, %17 : vector<16x128xf32>
    %cst_12 = arith.constant 1.000000e+00 : f32
    %20 = vector.broadcast %cst_12 : f32 to vector<16x128xf32>
    %21 = arith.divf %20, %19 : vector<16x128xf32>
    %cst_13 = arith.constant 1.06140542 : f32
    %22 = vector.broadcast %cst_13 : f32 to vector<16x128xf32>
    %23 = arith.mulf %22, %21 : vector<16x128xf32>
    %cst_14 = arith.constant -1.45315206 : f32
    %24 = vector.broadcast %cst_14 : f32 to vector<16x128xf32>
    %25 = arith.addf %23, %24 : vector<16x128xf32>
    %26 = arith.mulf %25, %21 : vector<16x128xf32>
    %cst_15 = arith.constant 1.42141378 : f32
    %27 = vector.broadcast %cst_15 : f32 to vector<16x128xf32>
    %28 = arith.addf %26, %27 : vector<16x128xf32>
    %29 = arith.mulf %28, %21 : vector<16x128xf32>
    %cst_16 = arith.constant -0.284496725 : f32
    %30 = vector.broadcast %cst_16 : f32 to vector<16x128xf32>
    %31 = arith.addf %29, %30 : vector<16x128xf32>
    %32 = arith.mulf %31, %21 : vector<16x128xf32>
    %cst_17 = arith.constant 0.254829586 : f32
    %33 = vector.broadcast %cst_17 : f32 to vector<16x128xf32>
    %34 = arith.addf %32, %33 : vector<16x128xf32>
    %35 = arith.mulf %34, %21 : vector<16x128xf32>
    %cst_18 = arith.constant 0.000000e+00 : f32
    %36 = vector.broadcast %cst_18 : f32 to vector<16x128xf32>
    %37 = arith.subf %36, %15 : vector<16x128xf32>
    %38 = arith.mulf %37, %15 : vector<16x128xf32>
    %39 = math.exp %38 : vector<16x128xf32>
    %40 = arith.mulf %35, %39 : vector<16x128xf32>
    %cst_19 = arith.constant 1.000000e+00 : f32
    %41 = vector.broadcast %cst_19 : f32 to vector<16x128xf32>
    %42 = arith.subf %41, %40 : vector<16x128xf32>
    %43 = arith.mulf %14, %42 : vector<16x128xf32>
    %cst_20 = arith.constant 1.000000e+00 : f32
    %44 = vector.broadcast %cst_20 : f32 to vector<16x128xf32>
    %45 = arith.addf %44, %43 : vector<16x128xf32>
    %46 = arith.mulf %7, %45 : vector<16x128xf32>
    %47 = arith.truncf %46 : vector<16x128xf32> to vector<16x128xbf16>
    %c0_21 = arith.constant 0 : index
    %c0_22 = arith.constant 0 : index
    %48 = vector.load %arg4[%c0_21, %c0_22] : memref<128x128xbf16, #tpu.memory_space<vmem>>, vector<128x128xbf16>
    %cst_23 = arith.constant dense<0.000000e+00> : vector<16x128xf32>
    %49 = tpu.matmul %47, %48, %cst_23 {dimension_numbers = #tpu.dot_dimension_numbers<[1], [0], [0], [1], [0, 0, 1, 1], [], []>} : vector<16x128xbf16>, vector<128x128xbf16>, vector<16x128xf32> -> vector<16x128xf32>
    %c0_24 = arith.constant 0 : index
    %c0_25 = arith.constant 0 : index
    %50 = vector.load %arg5[%c0_24, %c0_25] : memref<1x128xf32, #tpu.memory_space<vmem>>, vector<1x128xf32>
    %51 = vector.broadcast %50 : vector<1x128xf32> to vector<16x128xf32>
    %52 = arith.addf %49, %51 : vector<16x128xf32>
    %c0_26 = arith.constant 0 : index
    %c0_27 = arith.constant 0 : index
    %53 = vector.load %arg6[%c0_26, %c0_27] : memref<16x128xf32, #tpu.memory_space<vmem>>, vector<16x128xf32>
    tpu.vector_store %arg6[%c0_26, %c0_27], %52 {strides = array<i32>} : memref<16x128xf32, #tpu.memory_space<vmem>>, vector<16x128xf32>,
    return
  }
  func.func @transform_0(%arg0: i32) -> (i32, i32) {
    %c0_i32 = arith.constant 0 : i32
    %c0_i32_0 = arith.constant 0 : i32
    return %arg0, %c0_i32 : i32, i32
  }
  func.func @transform_1(%arg0: i32) -> (i32, i32) {
    %c0_i32 = arith.constant 0 : i32
    %c0_i32_0 = arith.constant 0 : i32
    %c0_i32_1 = arith.constant 0 : i32
    return %c0_i32, %c0_i32_0 : i32, i32
  }
  func.func @transform_2(%arg0: i32) -> (i32, i32) {
    %c0_i32 = arith.constant 0 : i32
    %c0_i32_0 = arith.constant 0 : i32
    %c0_i32_1 = arith.constant 0 : i32
    return %c0_i32, %c0_i32_0 : i32, i32
  }
  func.func @transform_3(%arg0: i32) -> (i32, i32) {
    %c0_i32 = arith.constant 0 : i32
    %c0_i32_0 = arith.constant 0 : i32
    %c0_i32_1 = arith.constant 0 : i32
    return %c0_i32, %c0_i32_0 : i32, i32
  }
  func.func @transform_4(%arg0: i32) -> (i32, i32) {
    %c0_i32 = arith.constant 0 : i32
    %c0_i32_0 = arith.constant 0 : i32
    %c0_i32_1 = arith.constant 0 : i32
    return %c0_i32, %c0_i32_0 : i32, i32
  }
  func.func @transform_5(%arg0: i32) -> (i32, i32) {
    %c0_i32 = arith.constant 0 : i32
    %c0_i32_0 = arith.constant 0 : i32
    return %arg0, %c0_i32 : i32, i32
  }
}

</mosaic_0001>

<llo_original>
// kernel: tpu_custom_call.1
$region0: #{tpu_custom_call.1}
  #allocation0 [shape = 'u32[]', space=smem, size = 0x4, offset = 0x4, fixed_abs, tag = 'smem constant byte address 0x4 - core index']
  #allocation1 [shape = 'u32[144,128]{1,0:T(1,128)}', space=vmem, size = 0x12000, scoped, tag = 'internal scratch']
  %s0 = inlined_call_operand.hbm [shape: bf16[16,128], index: 0, kind: input, shape index: {}]
  %s1 = inlined_call_operand.hbm [shape: bf16[128,128], index: 1, kind: input, shape index: {}]
  %s2 = inlined_call_operand.vmem [shape: f32[1,128], index: 2, kind: input, shape index: {}]
  %s3 = inlined_call_operand.hbm [shape: bf16[128,128], index: 3, kind: input, shape index: {}]
  %s4 = inlined_call_operand.vmem [shape: f32[1,128], index: 4, kind: input, shape index: {}]
  %s5 = inlined_call_operand.hbm [shape: f32[16,128], index: 5, kind: output, shape index: {}]
  %s6 = sld [smem:[#allocation0]]
  $region42: #{tpu_custom_call.1} parent=0
    _
  %s8 = ssub.s32 1, %s6
  %s9 = scalar_select 0, %s8, %s6
  $region1: #{tpu_custom_call.1} parent=0
    #allocation2 [shape = 'u8[4096]{0}', space=vmem, size = 0x1000, scoped, tag = 'input window, operand 0, single buffered']
    #allocation3 [shape = 's32[1]{0}', space=sflag, size = 0x4, scoped, tag = 'scoped memory for tpu_custom_call.1']
    #allocation4 [shape = 's32[1]{0}', space=sflag, size = 0x4, scoped, tag = 'scoped memory for tpu_custom_call.1']
    #allocation5 [shape = 'u8[32768]{0}', space=vmem, size = 0x8000, scoped, tag = 'input window, operand 1, single buffered']
    #allocation6 [shape = 's32[1]{0}', space=sflag, size = 0x4, scoped, tag = 'scoped memory for tpu_custom_call.1']
    #allocation7 [shape = 'u8[32768]{0}', space=vmem, size = 0x8000, scoped, tag = 'input window, operand 3, single buffered']
    #allocation8 [shape = 'u8[8192]{0}', space=vmem, size = 0x2000, scoped, tag = 'output window, operand 0, single buffered']
    %10 = vsyncpa [#allocation3], 0
    %11 = vsyncpa [#allocation6], 0
    %12 = vsyncpa [#allocation4], 0
    // Predicated region
    $region2: #{tpu_custom_call.1} parent=1 // pred_check
      _
    $region3: #{tpu_custom_call.1} parent=1 // pred_check_branch
      %14 = sbr.rel (0) target = $region5
    $region4: #{tpu_custom_call.1} parent=1 // pred_region
      %s16 = ssub.s32 128, 128
      %17 = vsyncadd [#allocation3], %s16
      %s18 = sshll.u32 [#allocation2], 4
      %s19 = int_to_ptr.vmem [resolvable:$true] %s18
      %24 = dma.hbm_to_vmem [thread:$0]  %s0, 128, %s19, [#allocation3], 64, 64, 4
    $region5: #{tpu_custom_call.1} parent=1 // pred_fallthru
      _
    // Predicated region
    $region6: #{tpu_custom_call.1} parent=1 // pred_check
      _
    $region7: #{tpu_custom_call.1} parent=1 // pred_check_branch
      %26 = sbr.rel (0) target = $region9
    $region8: #{tpu_custom_call.1} parent=1 // pred_region
      %s28 = ssub.s32 1024, 1024
      %29 = vsyncadd [#allocation6], %s28
      %s30 = sshll.u32 [#allocation5], 4
      %s31 = int_to_ptr.vmem [resolvable:$true] %s30
      %36 = dma.hbm_to_vmem [thread:$0]  %s1, 1024, %s31, [#allocation6], 64, 64, 4
    $region9: #{tpu_custom_call.1} parent=1 // pred_fallthru
      _
    // Predicated region
    $region10: #{tpu_custom_call.1} parent=1 // pred_check
      _
    $region11: #{tpu_custom_call.1} parent=1 // pred_check_branch
      %38 = sbr.rel (0) target = $region13
    $region12: #{tpu_custom_call.1} parent=1 // pred_region
      _
    $region13: #{tpu_custom_call.1} parent=1 // pred_fallthru
      _
    // Predicated region
    $region14: #{tpu_custom_call.1} parent=1 // pred_check
      _
    $region15: #{tpu_custom_call.1} parent=1 // pred_check_branch
      %40 = sbr.rel (0) target = $region17
    $region16: #{tpu_custom_call.1} parent=1 // pred_region
      %s42 = ssub.s32 1024, 1024
      %43 = vsyncadd [#allocation6], %s42
      %s44 = sshll.u32 [#allocation7], 4
      %s45 = int_to_ptr.vmem [resolvable:$true] %s44
      %50 = dma.hbm_to_vmem [thread:$0]  %s3, 1024, %s45, [#allocation6], 64, 64, 4
    $region17: #{tpu_custom_call.1} parent=1 // pred_fallthru
      _
    // Predicated region
    $region18: #{tpu_custom_call.1} parent=1 // pred_check
      _
    $region19: #{tpu_custom_call.1} parent=1 // pred_check_branch
      %52 = sbr.rel (0) target = $region21
    $region20: #{tpu_custom_call.1} parent=1 // pred_region
      _
    $region21: #{tpu_custom_call.1} parent=1 // pred_fallthru
      _
    // Predicated region
    $region22: #{tpu_custom_call.1} parent=1 // pred_check
      _
    $region23: #{tpu_custom_call.1} parent=1 // pred_check_branch
      %54 = sbr.rel (0) target = $region25
    $region24: #{tpu_custom_call.1} parent=1 // pred_region
      %55 = dma.done [#allocation3], 128
    $region25: #{tpu_custom_call.1} parent=1 // pred_fallthru
      _
    // Predicated region
    $region26: #{tpu_custom_call.1} parent=1 // pred_check
      _
    $region27: #{tpu_custom_call.1} parent=1 // pred_check_branch
      %57 = sbr.rel (0) target = $region29
    $region28: #{tpu_custom_call.1} parent=1 // pred_region
      %58 = dma.done [#allocation6], 1024
    $region29: #{tpu_custom_call.1} parent=1 // pred_fallthru
      _
    // Predicated region
    $region30: #{tpu_custom_call.1} parent=1 // pred_check
      _
    $region31: #{tpu_custom_call.1} parent=1 // pred_check_branch
      %60 = sbr.rel (0) target = $region33
    $region32: #{tpu_custom_call.1} parent=1 // pred_region
      %61 = dma.done [#allocation6], 1024
    $region33: #{tpu_custom_call.1} parent=1 // pred_fallthru
      _
    %v63 = vld [vmem:[#allocation2] sm:$0xf]
    %v64 = vld [vmem:[#allocation2 + $0x4] sm:$0xf]
    %v65 = vld [vmem:[#allocation5] sm:$0xf]
    %v66 = vld [vmem:[#allocation5 + $0x4] sm:$0xf]
    %v67 = vld [vmem:[#allocation5 + $0x8] sm:$0xf]
    %v68 = vld [vmem:[#allocation5 + $0xc] sm:$0xf]
    %v69 = vld [vmem:[#allocation5 + $0x10] sm:$0xf]
    %v70 = vld [vmem:[#allocation5 + $0x14] sm:$0xf]
    %v71 = vld [vmem:[#allocation5 + $0x18] sm:$0xf]
    %v72 = vld [vmem:[#allocation5 + $0x1c] sm:$0xf]
    %v73 = vld [vmem:[#allocation5 + $0x20] sm:$0xf]
    %v74 = vld [vmem:[#allocation5 + $0x24] sm:$0xf]
    %v75 = vld [vmem:[#allocation5 + $0x28] sm:$0xf]
    %v76 = vld [vmem:[#allocation5 + $0x2c] sm:$0xf]
    %v77 = vld [vmem:[#allocation5 + $0x30] sm:$0xf]
    %v78 = vld [vmem:[#allocation5 + $0x34] sm:$0xf]
    %v79 = vld [vmem:[#allocation5 + $0x38] sm:$0xf]
    %v80 = vld [vmem:[#allocation5 + $0x3c] sm:$0xf]
    %v81 = vld [vmem:[%s2] sm:$0x1]
    %v83 = vlaneseq
    %v84 = vshrl.u32 %v83, 7
    %v85 = vsub.s32 0, %v84
    %v86 = vrot.slane %v81, %v85
    %v90 = vunpack.c.l.b16 %v63
    %v91 = vunpack.c.l.b16 %v64
    %v92 = vpack.c.b16 %v91, %v90
    %v110 = vunpack.c.l.b16 %v65
    %v111 = vunpack.c.l.b16 %v66
    %v112 = vunpack.c.l.b16 %v67
    %v113 = vunpack.c.l.b16 %v68
    %v114 = vunpack.c.l.b16 %v69
    %v115 = vunpack.c.l.b16 %v70
    %v116 = vunpack.c.l.b16 %v71
    %v117 = vunpack.c.l.b16 %v72
    %v118 = vunpack.c.l.b16 %v73
    %v119 = vunpack.c.l.b16 %v74
    %v120 = vunpack.c.l.b16 %v75
    %v121 = vunpack.c.l.b16 %v76
    %v122 = vunpack.c.l.b16 %v77
    %v123 = vunpack.c.l.b16 %v78
    %v124 = vunpack.c.l.b16 %v79
    %v125 = vunpack.c.l.b16 %v80
    %v126 = vpack.c.b16 %v111, %v110
    %v127 = vpack.c.b16 %v113, %v112
    %v128 = vpack.c.b16 %v115, %v114
    %v129 = vpack.c.b16 %v117, %v116
    %v130 = vpack.c.b16 %v119, %v118
    %v131 = vpack.c.b16 %v121, %v120
    %v132 = vpack.c.b16 %v123, %v122
    %v133 = vpack.c.b16 %v125, %v124
    %142 = vmatprep.subr.bf16.mxu0 0
    %143 = vmatpush1.bf16.msra.mxu0 %v133
    %144 = vmatprep.subr.bf16.mxu0 0
    %145 = vmatpush1.bf16.msra.mxu0 %v132
    %146 = vmatprep.subr.bf16.mxu0 0
    %147 = vmatpush1.bf16.msra.mxu0 %v131
    %148 = vmatprep.subr.bf16.mxu0 0
    %149 = vmatpush1.bf16.msra.mxu0 %v130
    %150 = vmatprep.subr.bf16.mxu0 0
    %151 = vmatpush1.bf16.msra.mxu0 %v129
    %152 = vmatprep.subr.bf16.mxu0 0
    %153 = vmatpush1.bf16.msra.mxu0 %v128
    %154 = vmatprep.subr.bf16.mxu0 0
    %155 = vmatpush1.bf16.msra.mxu0 %v127
    %156 = vmatprep.subr.bf16.mxu0 0
    %157 = vmatpush1.bf16.msra.mxu0 %v126
    %158 = vmatprep.subr.bf16.mxu0 0
    %159 = vmatpush2.bf16.msra.mxu0 0
    %160 = vmatprep.subr.bf16.mxu0 0
    %161 = vmatpush2.bf16.msra.mxu0 0
    %162 = vmatprep.subr.bf16.mxu0 0
    %163 = vmatpush2.bf16.msra.mxu0 0
    %164 = vmatprep.subr.bf16.mxu0 0
    %165 = vmatpush2.bf16.msra.mxu0 0
    %166 = vmatprep.subr.bf16.mxu0 0
    %167 = vmatpush2.bf16.msra.mxu0 0
    %168 = vmatprep.subr.bf16.mxu0 0
    %169 = vmatpush2.bf16.msra.mxu0 0
    %170 = vmatprep.subr.bf16.mxu0 0
    %171 = vmatpush2.bf16.msra.mxu0 0
    %172 = vmatprep.subr.bf16.mxu0 0
    %173 = vmatpush2.bf16.msra.mxu0 0
    %174 = vmatprep.mubr.bf16.mxu0 0
    %175 = vmatmul.mubr.bf16.gmra.mxu0 %v92
    %v176 = vpop.f32.mrf.mxu0
    %v177 = vadd.f32 %v86, %v176
    %v178 = vpop.f32.mrf.mxu0
    %v179 = vpop.f32.mrf.mxu0
    %v180 = vadd.f32 %v86, %v179
    %v181 = vpop.f32.mrf.mxu0
    %182 = vdwg.mxu0
    %v183 = vmul.f32 %v177, 0.5
    %v184 = vmul.f32 %v180, 0.5
    %v185 = vmul.f32 %v177, 0.70710677
    %v186 = vmul.f32 %v180, 0.70710677
    %vm187 = vcmp.lt.f32.partialorder %v185, 0.0
    %vm188 = vcmp.lt.f32.partialorder %v186, 0.0
    %v189 = vsel %vm187, -1.0, 1.0
    %v190 = vsel %vm188, -1.0, 1.0
    %v191 = vand.u32 2147483647, %v185
    %v192 = vand.u32 2147483647, %v186
    %v193 = vmul.f32 %v191, 0.3275911
    %v194 = vmul.f32 %v192, 0.3275911
    %v195 = vadd.f32 %v193, 1.0
    %v196 = vadd.f32 %v194, 1.0
    %v197 = vrcp.pop %v195
    %v198 = vmul.f32 1.0, %v197
    %v199 = vrcp.pop %v196
    %v200 = vmul.f32 1.0, %v199
    %v201 = vmul.f32 %v198, 1.0614054
    %v202 = vmul.f32 %v200, 1.0614054
    %v203 = vadd.f32 %v201, -1.4531521
    %v204 = vadd.f32 %v202, -1.4531521
    %v205 = vmul.f32 %v203, %v198
    %v206 = vmul.f32 %v204, %v200
    %v207 = vadd.f32 %v205, 1.4214138
    %v208 = vadd.f32 %v206, 1.4214138
    %v209 = vmul.f32 %v207, %v198
    %v210 = vmul.f32 %v208, %v200
    %v211 = vadd.f32 %v209, -0.28449672
    %v212 = vadd.f32 %v210, -0.28449672
    %v213 = vmul.f32 %v211, %v198
    %v214 = vmul.f32 %v212, %v200
    %v215 = vadd.f32 %v213, 0.2548296
    %v216 = vadd.f32 %v214, 0.2548296
    %v217 = vmul.f32 %v215, %v198
    %v218 = vmul.f32 %v216, %v200
    %v219 = vsub.f32 0.0, %v191
    %v220 = vsub.f32 0.0, %v192
    %v221 = vmul.f32 %v219, %v191
    %v222 = vmul.f32 %v220, %v192
    %v223 = vmul.f32 %v221, 1.442695
    %v224 = vpow.pop %v223
    %v225 = vmul.f32 %v222, 1.442695
    %v226 = vpow.pop %v225
    %v227 = vmul.f32 %v217, %v224
    %v228 = vmul.f32 %v218, %v226
    %v229 = vsub.f32 1.0, %v227
    %v230 = vsub.f32 1.0, %v228
    %v231 = vmul.f32 %v189, %v229
    %v232 = vmul.f32 %v190, %v230
    %v233 = vadd.f32 %v231, 1.0
    %v234 = vadd.f32 %v232, 1.0
    %v235 = vmul.f32 %v183, %v233
    %v236 = vmul.f32 %v184, %v234
    %v237 = vpack.c.bf16 %v236, %v235
    %v238 = vld [vmem:[#allocation7] sm:$0xf]
    %v239 = vld [vmem:[#allocation7 + $0x4] sm:$0xf]
    %v240 = vld [vmem:[#allocation7 + $0x8] sm:$0xf]
    %v241 = vld [vmem:[#allocation7 + $0xc] sm:$0xf]
    %v242 = vld [vmem:[#allocation7 + $0x10] sm:$0xf]
    %v243 = vld [vmem:[#allocation7 + $0x14] sm:$0xf]
    %v244 = vld [vmem:[#allocation7 + $0x18] sm:$0xf]
    %v245 = vld [vmem:[#allocation7 + $0x1c] sm:$0xf]
    %v246 = vld [vmem:[#allocation7 + $0x20] sm:$0xf]
    %v247 = vld [vmem:[#allocation7 + $0x24] sm:$0xf]
    %v248 = vld [vmem:[#allocation7 + $0x28] sm:$0xf]
    %v249 = vld [vmem:[#allocation7 + $0x2c] sm:$0xf]
    %v250 = vld [vmem:[#allocation7 + $0x30] sm:$0xf]
    %v251 = vld [vmem:[#allocation7 + $0x34] sm:$0xf]
    %v252 = vld [vmem:[#allocation7 + $0x38] sm:$0xf]
    %v253 = vld [vmem:[#allocation7 + $0x3c] sm:$0xf]
    %v254 = vld [vmem:[%s4] sm:$0x1]
    %v256 = vlaneseq
    %v257 = vshrl.u32 %v256, 7
    %v258 = vsub.s32 0, %v257
    %v259 = vrot.slane %v254, %v258
    %v277 = vunpack.c.l.b16 %v238
    %v278 = vunpack.c.l.b16 %v239
    %v279 = vunpack.c.l.b16 %v240
    %v280 = vunpack.c.l.b16 %v241
    %v281 = vunpack.c.l.b16 %v242
    %v282 = vunpack.c.l.b16 %v243
    %v283 = vunpack.c.l.b16 %v244
    %v284 = vunpack.c.l.b16 %v245
    %v285 = vunpack.c.l.b16 %v246
    %v286 = vunpack.c.l.b16 %v247
    %v287 = vunpack.c.l.b16 %v248
    %v288 = vunpack.c.l.b16 %v249
    %v289 = vunpack.c.l.b16 %v250
    %v290 = vunpack.c.l.b16 %v251
    %v291 = vunpack.c.l.b16 %v252
    %v292 = vunpack.c.l.b16 %v253
    %v293 = vpack.c.b16 %v278, %v277
    %v294 = vpack.c.b16 %v280, %v279
    %v295 = vpack.c.b16 %v282, %v281
    %v296 = vpack.c.b16 %v284, %v283
    %v297 = vpack.c.b16 %v286, %v285
    %v298 = vpack.c.b16 %v288, %v287
    %v299 = vpack.c.b16 %v290, %v289
    %v300 = vpack.c.b16 %v292, %v291
    %309 = vmatprep.subr.bf16.mxu0 0
    %310 = vmatpush1.bf16.msra.mxu0 %v300
    %311 = vmatprep.subr.bf16.mxu0 0
    %312 = vmatpush1.bf16.msra.mxu0 %v299
    %313 = vmatprep.subr.bf16.mxu0 0
    %314 = vmatpush1.bf16.msra.mxu0 %v298
    %315 = vmatprep.subr.bf16.mxu0 0
    %316 = vmatpush1.bf16.msra.mxu0 %v297
    %317 = vmatprep.subr.bf16.mxu0 0
    %318 = vmatpush1.bf16.msra.mxu0 %v296
    %319 = vmatprep.subr.bf16.mxu0 0
    %320 = vmatpush1.bf16.msra.mxu0 %v295
    %321 = vmatprep.subr.bf16.mxu0 0
    %322 = vmatpush1.bf16.msra.mxu0 %v294
    %323 = vmatprep.subr.bf16.mxu0 0
    %324 = vmatpush1.bf16.msra.mxu0 %v293
    %325 = vmatprep.subr.bf16.mxu0 0
    %326 = vmatpush2.bf16.msra.mxu0 0
    %327 = vmatprep.subr.bf16.mxu0 0
    %328 = vmatpush2.bf16.msra.mxu0 0
    %329 = vmatprep.subr.bf16.mxu0 0
    %330 = vmatpush2.bf16.msra.mxu0 0
    %331 = vmatprep.subr.bf16.mxu0 0
    %332 = vmatpush2.bf16.msra.mxu0 0
    %333 = vmatprep.subr.bf16.mxu0 0
    %334 = vmatpush2.bf16.msra.mxu0 0
    %335 = vmatprep.subr.bf16.mxu0 0
    %336 = vmatpush2.bf16.msra.mxu0 0
    %337 = vmatprep.subr.bf16.mxu0 0
    %338 = vmatpush2.bf16.msra.mxu0 0
    %339 = vmatprep.subr.bf16.mxu0 0
    %340 = vmatpush2.bf16.msra.mxu0 0
    %341 = vmatprep.mubr.bf16.mxu0 0
    %342 = vmatmul.mubr.bf16.gmra.mxu0 %v237
    %v343 = vpop.f32.mrf.mxu0
    %v344 = vadd.f32 %v259, %v343
    %v345 = vpop.f32.mrf.mxu0
    %v346 = vpop.f32.mrf.mxu0
    %v347 = vadd.f32 %v259, %v346
    %v348 = vpop.f32.mrf.mxu0
    %349 = vdwg.mxu0
    %350 = vst [vmem:[#allocation8] sm:$0xff] %v344
    %351 = vst [vmem:[#allocation8 + $0x8] sm:$0xff] %v347
    // Predicated region
    $region34: #{tpu_custom_call.1} parent=1 // pred_check
      _
    $region35: #{tpu_custom_call.1} parent=1 // pred_check_branch
      %353 = sbr.rel (0) target = $region37
    $region36: #{tpu_custom_call.1} parent=1 // pred_region
      %s355 = ssub.s32 256, 256
      %356 = vsyncadd [#allocation4], %s355
      %s357 = sshll.u32 [#allocation8], 4
      %s358 = int_to_ptr.vmem [resolvable:$true] %s357
      %363 = dma.vmem_to_hbm [thread:$0]  %s358, 256, %s5, [#allocation4], 128, 128, 8
    $region37: #{tpu_custom_call.1} parent=1 // pred_fallthru
      _
    // Predicated region
    $region38: #{tpu_custom_call.1} parent=1 // pred_check
      _
    $region39: #{tpu_custom_call.1} parent=1 // pred_check_branch
      %365 = sbr.rel (0) target = $region41
    $region40: #{tpu_custom_call.1} parent=1 // pred_region
      %366 = dma.done [#allocation4], 256
    $region41: #{tpu_custom_call.1} parent=1 // pred_fallthru
      _
    %367 = vsyncpa [#allocation3], 1
    %368 = vsyncpa [#allocation6], 1
    %369 = vsyncpa [#allocation4], 1

</llo_original>
